<compile_context>
chip_gen: v5e
topology: v5e:2x2
jax: 0.10.0
libtpu: 0.0.40
codegen_flags: <defaults>
</compile_context>

<pallas_src>
import jax
import jax.numpy as jnp
from jax.experimental import pallas as pl
from jax.experimental.pallas import tpu as pltpu

LANE_COLS = 1024      # lane-dense last dim (multiple of the 128-lane vreg width)
MAX_TILE_ROWS = 512   # 512 x 1024 x 4B = 2 MiB per f32 input block


def _round_up(x, m):
    return ((x + m - 1) // m) * m


def _sublane_multiple(dtype):
    # f32 -> 8 sublanes, bf16/f16 -> 16, int8/fp8 -> 32 (packed dtypes).
    return max(8, 32 // jnp.dtype(dtype).itemsize)


def _pixel_accuracy_kernel(p_ref, l_ref, o_ref):
    # o_ref: int32 SMEM partial-count for the current chunk (leading grid axis).
    # Zero it at the start of the inner (reduction) grid axis.
    @pl.when(pl.program_id(1) == 0)
    def _():
        o_ref[0, 0] = jnp.int32(0)

    # sigmoid(p) > 0.5  <=>  p > 0  -- no EUP work, native-dtype compare.
    x1 = p_ref[...] > 0
    if jnp.issubdtype(l_ref.dtype, jnp.floating):
        x2 = l_ref[...] > jnp.asarray(0.5, dtype=l_ref.dtype)
    else:
        x2 = l_ref[...] > 0  # for integer labels, >0.5 is equivalent to >0
    correct = x1 == x2
    o_ref[0, 0] += jnp.sum(correct.astype(jnp.int32))


def pixel_accuracy(predict, label):
    """Pallas pixel accuracy. predict/label: same shape (e.g. NCHW)."""
    if predict.shape != label.shape:
        raise Exception(
            f"predict shape {predict.shape} is different from label shape {label.shape}"
        )
    total = 1
    for s in predict.shape:
        total *= int(s)

    p = predict.reshape(-1)
    l = label.reshape(-1)

    # Tile geometry: lane-dense (rows, 1024) slab, row-tiles as big as useful.
    sub = max(_sublane_multiple(p.dtype), _sublane_multiple(l.dtype))
    rows_needed = pl.cdiv(total, LANE_COLS)
    tile_rows = min(MAX_TILE_ROWS, _round_up(rows_needed, sub))

    num_tiles = pl.cdiv(rows_needed, tile_rows)
    # 2-way parallel split across the leading grid axis (both TCs on v7x).
    num_chunks = 2 if num_tiles >= 2 else 1
    num_tiles = _round_up(num_tiles, num_chunks)
    padded_rows = num_tiles * tile_rows
    pad = padded_rows * LANE_COLS - total

    # Padded elements are forced to be "incorrect" (predict<=0 -> False,
    # label>0.5 -> True) so they contribute 0 to the correct-count; no mask
    # needed in the kernel, and we divide by the true element count below.
    p2d = jnp.pad(p, (0, pad), constant_values=-1).reshape(padded_rows, LANE_COLS)
    l2d = jnp.pad(l, (0, pad), constant_values=1).reshape(padded_rows, LANE_COLS)

    tiles_per_chunk = num_tiles // num_chunks
    grid = (num_chunks, tiles_per_chunk)

    counts = pl.pallas_call(
        _pixel_accuracy_kernel,
        out_shape=jax.ShapeDtypeStruct((num_chunks, 1), jnp.int32),
        grid_spec=pltpu.PrefetchScalarGridSpec(
            num_scalar_prefetch=0,
            grid=grid,
            in_specs=[
                pl.BlockSpec(
                    (tile_rows, LANE_COLS),
                    lambda c, i: (c * tiles_per_chunk + i, 0),
                ),
                pl.BlockSpec(
                    (tile_rows, LANE_COLS),
                    lambda c, i: (c * tiles_per_chunk + i, 0),
                ),
            ],
            out_specs=pl.BlockSpec(
                (1, 1), lambda c, i: (c, 0), memory_space=pltpu.SMEM
            ),
        ),
        compiler_params=pltpu.CompilerParams(
            dimension_semantics=("parallel", "arbitrary"),
            vmem_limit_bytes=32 * 1024 * 1024,
        ),
    )(p2d, l2d)

    # Exact integer partial counts; final sum + divide in the wrapper.
    return jnp.sum(counts).astype(jnp.float32) / jnp.float32(total)


def pixel_accuracy_ref(predict, label):
    x1 = jax.nn.sigmoid(predict) > 0.5
    x2 = label > 0.5
    correct = x1 == x2
    return jnp.sum(correct).astype(jnp.float32) / jnp.float32(correct.size)


if __name__ == "__main__":
    key = jax.random.PRNGKey(0)
    k1, k2 = jax.random.split(key)
    # Small NCHW shapes consistent with a segmentation logit / binary label map.
    B, C, H, W = 2, 4, 16, 16
    predict = jax.random.normal(k1, (B, C, H, W), dtype=jnp.float32)
    label = (jax.random.uniform(k2, (B, C, H, W), dtype=jnp.float32) > 0.5).astype(
        jnp.float32
    )

    acc = pixel_accuracy(predict, label)
    acc = jax.block_until_ready(acc)

    ref = pixel_accuracy_ref(predict, label)
    assert jnp.allclose(acc, ref, atol=1e-6), (acc, ref)
    print("KERNEL_OK")
</pallas_src>

<mosaic_0001>
module attributes {stable_mosaic.version = 11 : i64} {
  func.func @_pixel_accuracy_kernel(%arg0: i32, %arg1: i32, %arg2: memref<8x1024xf32, #tpu.memory_space<vmem>>, %arg3: memref<8x1024xf32, #tpu.memory_space<vmem>>, %arg4: memref<1x1xi32, #tpu.memory_space<smem>>) attributes {dimension_semantics = [#tpu.dimension_semantics<parallel>, #tpu.dimension_semantics<arbitrary>], iteration_bounds = array<i64: 1, 1>, scalar_prefetch = 0 : i64, scratch_operands = 0 : i64, tpu.core_type = #tpu.core_type<tc>, window_params = [{transform_indices = @transform_0, window_bounds = array<i64: 8, 1024>}, {transform_indices = @transform_1, window_bounds = array<i64: 8, 1024>}, {transform_indices = @transform_2, window_bounds = array<i64: 1, 1>}]} {
    %c0_i32 = arith.constant 0 : i32
    %0 = arith.cmpi eq, %arg1, %c0_i32 : i32
    %1 = arith.extui %0 : i1 to i32
    %c0_i32_0 = arith.constant 0 : i32
    %2 = arith.cmpi ne, %1, %c0_i32_0 : i32
    scf.if %2 {
      %c0_i32_11 = arith.constant 0 : i32
      %c0_12 = arith.constant 0 : index
      %c0_13 = arith.constant 0 : index
      %19 = memref.load %arg4[%c0_12, %c0_13] : memref<1x1xi32, #tpu.memory_space<smem>>
      memref.store %c0_i32_11, %arg4[%c0_12, %c0_13] : memref<1x1xi32, #tpu.memory_space<smem>>
    } else {
    }
    %c0 = arith.constant 0 : index
    %c0_1 = arith.constant 0 : index
    %3 = vector.load %arg2[%c0, %c0_1] : memref<8x1024xf32, #tpu.memory_space<vmem>>, vector<8x1024xf32>
    %cst = arith.constant 0.000000e+00 : f32
    %4 = vector.broadcast %cst : f32 to vector<8x1024xf32>
    %5 = arith.cmpf ogt, %3, %4 : vector<8x1024xf32>
    %c0_2 = arith.constant 0 : index
    %c0_3 = arith.constant 0 : index
    %6 = vector.load %arg3[%c0_2, %c0_3] : memref<8x1024xf32, #tpu.memory_space<vmem>>, vector<8x1024xf32>
    %cst_4 = arith.constant 5.000000e-01 : f32
    %7 = vector.broadcast %cst_4 : f32 to vector<8x1024xf32>
    %8 = arith.cmpf ogt, %6, %7 : vector<8x1024xf32>
    %9 = arith.xori %5, %8 : vector<8x1024xi1>
    %cst_5 = arith.constant dense<true> : vector<8x1024xi1>
    %10 = arith.xori %9, %cst_5 : vector<8x1024xi1>
    %c0_6 = arith.constant 0 : index
    %c0_7 = arith.constant 0 : index
    %11 = memref.load %arg4[%c0_6, %c0_7] : memref<1x1xi32, #tpu.memory_space<smem>>
    %12 = arith.extui %10 : vector<8x1024xi1> to vector<8x1024xi32>
    %13 = vector.shape_cast %12 : vector<8x1024xi32> to vector<1x8x1024xi32>
    %cst_8 = arith.constant dense<0> : vector<1xi32>
    %14 = vector.multi_reduction <add>, %13, %cst_8 [1, 2] : vector<1x8x1024xi32> to vector<1xi32>
    %15 = vector.shape_cast %14 : vector<1xi32> to vector<1x1x1xi32>
    %16 = vector.extract %15[0, 0, 0] : i32 from vector<1x1x1xi32>
    %17 = arith.addi %11, %16 : i32
    %c0_9 = arith.constant 0 : index
    %c0_10 = arith.constant 0 : index
    %18 = memref.load %arg4[%c0_9, %c0_10] : memref<1x1xi32, #tpu.memory_space<smem>>
    memref.store %17, %arg4[%c0_9, %c0_10] : memref<1x1xi32, #tpu.memory_space<smem>>
    return
  }
  func.func @transform_0(%arg0: i32, %arg1: i32) -> (i32, i32) {
    %c1_i32 = arith.constant 1 : i32
    %0 = arith.muli %arg0, %c1_i32 : i32
    %1 = arith.addi %0, %arg1 : i32
    %c0_i32 = arith.constant 0 : i32
    %c0_i32_0 = arith.constant 0 : i32
    return %1, %c0_i32 : i32, i32
  }
  func.func @transform_1(%arg0: i32, %arg1: i32) -> (i32, i32) {
    %c1_i32 = arith.constant 1 : i32
    %0 = arith.muli %arg0, %c1_i32 : i32
    %1 = arith.addi %0, %arg1 : i32
    %c0_i32 = arith.constant 0 : i32
    %c0_i32_0 = arith.constant 0 : i32
    return %1, %c0_i32 : i32, i32
  }
  func.func @transform_2(%arg0: i32, %arg1: i32) -> (i32, i32) {
    %c0_i32 = arith.constant 0 : i32
    %c0_i32_0 = arith.constant 0 : i32
    return %arg0, %c0_i32 : i32, i32
  }
}

</mosaic_0001>

<llo_original>
// kernel: tpu_custom_call.1
$region0: #{tpu_custom_call.1}
  #allocation0 [shape = 'u32[]', space=smem, size = 0x4, offset = 0x4, fixed_abs, tag = 'smem constant byte address 0x4 - core index']
  #allocation1 [shape = 'u32[72,128]{1,0:T(1,128)}', space=vmem, size = 0x9000, scoped, tag = 'internal scratch']
  %s0 = inlined_call_operand.hbm [shape: f32[8,1024], index: 0, kind: input, shape index: {}]
  %s1 = inlined_call_operand.hbm [shape: f32[8,1024], index: 1, kind: input, shape index: {}]
  %s2 = inlined_call_operand.hbm [shape: s32[1,1], index: 2, kind: output, shape index: {}]
  %s3 = sld [smem:[#allocation0]]
  $region30: #{tpu_custom_call.1} parent=0
    _
  %s5 = ssub.s32 1, %s3
  %s6 = scalar_select 0, %s5, %s3
  $region1: #{tpu_custom_call.1} parent=0
    #allocation2 [shape = 'u8[32768]{0}', space=vmem, size = 0x8000, scoped, tag = 'input window, operand 0, single buffered']
    #allocation3 [shape = 's32[1]{0}', space=sflag, size = 0x4, scoped, tag = 'scoped memory for tpu_custom_call.1']
    #allocation4 [shape = 's32[1]{0}', space=sflag, size = 0x4, scoped, tag = 'scoped memory for tpu_custom_call.1']
    #allocation5 [shape = 'u8[32768]{0}', space=vmem, size = 0x8000, scoped, tag = 'input window, operand 1, single buffered']
    #allocation6 [shape = 's32[1]{0}', space=sflag, size = 0x4, scoped, tag = 'scoped memory for tpu_custom_call.1']
    #allocation7 [shape = 'u8[512]{0}', space=smem, size = 0x200, scoped, tag = 'output window, operand 0, single buffered']
    %7 = vsyncpa [#allocation3], 0
    %8 = vsyncpa [#allocation6], 0
    %9 = vsyncpa [#allocation4], 0
    // Predicated region
    $region2: #{tpu_custom_call.1} parent=1 // pred_check
      _
    $region3: #{tpu_custom_call.1} parent=1 // pred_check_branch
      %11 = sbr.rel (0) target = $region5
    $region4: #{tpu_custom_call.1} parent=1 // pred_region
      %s12 = sadd.s32 0, 0
      %14 = vsyncadd [#allocation3], 0
      %s15 = smul.addr %s12, 8
      %s16 = smul.addr %s15, 8
      %s17 = scalar_lea.hbm %s0, %s16
      %s19 = sshll.u32 %s17, 4
      %s20 = int_to_ptr.hbm [resolvable:$true] %s19
      %s21 = sshll.u32 [#allocation2], 4
      %s22 = int_to_ptr.vmem [resolvable:$true] %s21
      %24 = dma.hbm_to_vmem [thread:$0]  %s20, 1024, %s22, [#allocation3]
    $region5: #{tpu_custom_call.1} parent=1 // pred_fallthru
      _
    // Predicated region
    $region6: #{tpu_custom_call.1} parent=1 // pred_check
      _
    $region7: #{tpu_custom_call.1} parent=1 // pred_check_branch
      %26 = sbr.rel (0) target = $region9
    $region8: #{tpu_custom_call.1} parent=1 // pred_region
      %s27 = sadd.s32 0, 0
      %29 = vsyncadd [#allocation6], 0
      %s30 = smul.addr %s27, 8
      %s31 = smul.addr %s30, 8
      %s32 = scalar_lea.hbm %s1, %s31
      %s34 = sshll.u32 %s32, 4
      %s35 = int_to_ptr.hbm [resolvable:$true] %s34
      %s36 = sshll.u32 [#allocation5], 4
      %s37 = int_to_ptr.vmem [resolvable:$true] %s36
      %39 = dma.hbm_to_vmem [thread:$0]  %s35, 1024, %s37, [#allocation6]
    $region9: #{tpu_custom_call.1} parent=1 // pred_fallthru
      _
    // Predicated region
    $region10: #{tpu_custom_call.1} parent=1 // pred_check
      _
    $region11: #{tpu_custom_call.1} parent=1 // pred_check_branch
      %41 = sbr.rel (0) target = $region13
    $region12: #{tpu_custom_call.1} parent=1 // pred_region
      %43 = dma.done [#allocation3], 1024
    $region13: #{tpu_custom_call.1} parent=1 // pred_fallthru
      _
    // Predicated region
    $region14: #{tpu_custom_call.1} parent=1 // pred_check
      _
    $region15: #{tpu_custom_call.1} parent=1 // pred_check_branch
      %45 = sbr.rel (0) target = $region17
    $region16: #{tpu_custom_call.1} parent=1 // pred_region
      %47 = dma.done [#allocation6], 1024
    $region17: #{tpu_custom_call.1} parent=1 // pred_fallthru
      _
    %s48 = sadd.s32 0, 0
    %s49 = sadd.s32 0, 0
    %p50 = scmp.eq.s32.totalorder 0, 0
    // Predicated region
    $region18: #{tpu_custom_call.1} parent=1 // pred_check
      %p51 = pneg %p50
    $region19: #{tpu_custom_call.1} parent=1 // pred_check_branch
      %53 = sbr.rel (%p51) target = $region21
    $region20: #{tpu_custom_call.1} parent=1 // pred_region
      %s54 = scalar_lea.smem [#allocation7], 0
      %55 = sst [smem:[%s54]] 0
    $region21: #{tpu_custom_call.1} parent=1 // pred_fallthru
      _
    %v56 = vld [vmem:[#allocation2] sm:$0xff]
    %v57 = vld [vmem:[#allocation2 + $0x8] sm:$0xff]
    %v58 = vld [vmem:[#allocation2 + $0x10] sm:$0xff]
    %v59 = vld [vmem:[#allocation2 + $0x18] sm:$0xff]
    %v60 = vld [vmem:[#allocation2 + $0x20] sm:$0xff]
    %v61 = vld [vmem:[#allocation2 + $0x28] sm:$0xff]
    %v62 = vld [vmem:[#allocation2 + $0x30] sm:$0xff]
    %v63 = vld [vmem:[#allocation2 + $0x38] sm:$0xff]
    %vm64 = vcmp.gt.f32.partialorder %v56, 0.0
    %vm65 = vcmp.gt.f32.partialorder %v57, 0.0
    %vm66 = vcmp.gt.f32.partialorder %v58, 0.0
    %vm67 = vcmp.gt.f32.partialorder %v59, 0.0
    %vm68 = vcmp.gt.f32.partialorder %v60, 0.0
    %vm69 = vcmp.gt.f32.partialorder %v61, 0.0
    %vm70 = vcmp.gt.f32.partialorder %v62, 0.0
    %vm71 = vcmp.gt.f32.partialorder %v63, 0.0
    %v72 = vld [vmem:[#allocation5] sm:$0xff]
    %v73 = vld [vmem:[#allocation5 + $0x8] sm:$0xff]
    %v74 = vld [vmem:[#allocation5 + $0x10] sm:$0xff]
    %v75 = vld [vmem:[#allocation5 + $0x18] sm:$0xff]
    %v76 = vld [vmem:[#allocation5 + $0x20] sm:$0xff]
    %v77 = vld [vmem:[#allocation5 + $0x28] sm:$0xff]
    %v78 = vld [vmem:[#allocation5 + $0x30] sm:$0xff]
    %v79 = vld [vmem:[#allocation5 + $0x38] sm:$0xff]
    %vm80 = vcmp.gt.f32.partialorder %v72, 0.5
    %vm81 = vcmp.gt.f32.partialorder %v73, 0.5
    %vm82 = vcmp.gt.f32.partialorder %v74, 0.5
    %vm83 = vcmp.gt.f32.partialorder %v75, 0.5
    %vm84 = vcmp.gt.f32.partialorder %v76, 0.5
    %vm85 = vcmp.gt.f32.partialorder %v77, 0.5
    %vm86 = vcmp.gt.f32.partialorder %v78, 0.5
    %vm87 = vcmp.gt.f32.partialorder %v79, 0.5
    %vm88 = vmxor %vm64, %vm80
    %vm89 = vmxor %vm65, %vm81
    %vm90 = vmxor %vm66, %vm82
    %vm91 = vmxor %vm67, %vm83
    %vm92 = vmxor %vm68, %vm84
    %vm93 = vmxor %vm69, %vm85
    %vm94 = vmxor %vm70, %vm86
    %vm95 = vmxor %vm71, %vm87
    %vm96 = vmxor %vm88, 1
    %vm97 = vmxor %vm89, 1
    %vm98 = vmxor %vm90, 1
    %vm99 = vmxor %vm91, 1
    %vm100 = vmxor %vm92, 1
    %vm101 = vmxor %vm93, 1
    %vm102 = vmxor %vm94, 1
    %vm103 = vmxor %vm95, 1
    %s104 = sld [smem:[#allocation7]]
    %v105 = vsel %vm96, 1, 0
    %v106 = vsel %vm97, 1, 0
    %v107 = vsel %vm98, 1, 0
    %v108 = vsel %vm99, 1, 0
    %v109 = vsel %vm100, 1, 0
    %v110 = vsel %vm101, 1, 0
    %v111 = vsel %vm102, 1, 0
    %v112 = vsel %vm103, 1, 0
    %v113 = vadd.s32 %v105, %v109
    %v114 = vadd.s32 %v106, %v110
    %v115 = vadd.s32 %v107, %v111
    %v116 = vadd.s32 %v108, %v112
    %v117 = vadd.s32 %v113, %v114
    %v118 = vadd.s32 %v115, %v116
    %v119 = vadd.s32 %v117, %v118
    %v120 = vand.u32 %v119, 65535
    %v121 = vshrl.u32 %v119, 16
    %v122 = vcvt.s32.f32 %v120
    %v123 = vcvt.s32.f32 %v121
    %124 = vadd.xlane.f32.xlu0 %v122
    %v125 = vpop.xlane.xlu0 %124
    %126 = vadd.xlane.f32.xlu0 %v123
    %v127 = vpop.xlane.xlu0 %126
    %v128 = vcvt.f32.s32 %v125
    %v129 = vcvt.f32.s32 %v127
    %v130 = vshll.u32 %v129, 16
    %v131 = vadd.s32 %v130, %v128
    %v132 = vrot.slane %v131, 4
    %v133 = vadd.s32 %v131, %v132
    %v134 = vrot.slane %v133, 2
    %v135 = vadd.s32 %v133, %v134
    %v136 = vrot.slane %v135, 1
    %v137 = vadd.s32 %v135, %v136
    %s138 = vtos %v137
    %s139 = sadd.s32 %s104, %s138
    %s140 = scalar_lea.smem [#allocation7], 0
    %141 = sst [smem:[%s140]] %s139
    // Predicated region
    $region22: #{tpu_custom_call.1} parent=1 // pred_check
      _
    $region23: #{tpu_custom_call.1} parent=1 // pred_check_branch
      %143 = sbr.rel (0) target = $region25
    $region24: #{tpu_custom_call.1} parent=1 // pred_region
      %145 = vsyncadd [#allocation4], 0
      %s147 = sshll.u32 %s2, 4
      %s148 = int_to_ptr.hbm [resolvable:$true] %s147
      %150 = dma.smem_to_hbm [#allocation7], 16, %s148, [#allocation4]
    $region25: #{tpu_custom_call.1} parent=1 // pred_fallthru
      _
    // Predicated region
    $region26: #{tpu_custom_call.1} parent=1 // pred_check
      _
    $region27: #{tpu_custom_call.1} parent=1 // pred_check_branch
      %152 = sbr.rel (0) target = $region29
    $region28: #{tpu_custom_call.1} parent=1 // pred_region
      %154 = dma.done [#allocation4], 16
    $region29: #{tpu_custom_call.1} parent=1 // pred_fallthru
      _
    %155 = sfence
    %156 = vsyncpa [#allocation3], 1
    %157 = vsyncpa [#allocation6], 1
    %158 = vsyncpa [#allocation4], 1

</llo_original>
